<compile_context>
chip_gen: v7x
topology: tpu7x:2x2x1
jax: 0.10.0
libtpu: 0.0.40
codegen_flags: <defaults>
</compile_context>

<pallas_src>
import math

import jax
import jax.numpy as jnp
from jax.experimental import pallas as pl
from jax.experimental.pallas import tpu as pltpu


_VMEM = pl.BlockSpec(memory_space=pltpu.MemorySpace.VMEM)
_INV_LN10 = 1.0 / math.log(10.0)


def _scalar_out():
    return jax.ShapeDtypeStruct((1, 1), jnp.float32)


# ----------------------------- MSE (nn.MSELoss, reduction='mean') -----------------------
def _mse_kernel(p_ref, t_ref, o_ref):
    d = p_ref[...] - t_ref[...]
    ss = jnp.sum(d * d, axis=1, keepdims=True)            # (R, 1) lane reduce
    o_ref[...] = jnp.sum(ss, axis=0, keepdims=True) * (1.0 / d.size)


@jax.jit
def mse_loss(pred, targ):
    p2 = pred.astype(jnp.float32).reshape(-1, pred.shape[-1])
    t2 = targ.astype(jnp.float32).reshape(-1, targ.shape[-1])
    out = pl.pallas_call(
        _mse_kernel,
        out_shape=_scalar_out(),
        in_specs=[_VMEM, _VMEM],
        out_specs=_VMEM,
    )(p2, t2)
    return out[0, 0]


# ----------------------------- CE (loss_crossentropy) -----------------------------------
def _ce_kernel(p_ref, t_ref, o_ref):
    p = p_ref[...]
    t = t_ref[...]
    # a = -(1-t) * log10(1-p), b = -t * log10(p)
    a = -(1.0 - t) * (jnp.log(1.0 - p) * _INV_LN10)
    b = -t * (jnp.log(p) * _INV_LN10)
    s = a + b
    ss = jnp.sum(s, axis=1, keepdims=True)
    o_ref[...] = jnp.sum(ss, axis=0, keepdims=True) * (1.0 / s.size)


@jax.jit
def ce_loss(pred, targ):
    p2 = pred.astype(jnp.float32).reshape(-1, pred.shape[-1])
    t2 = targ.astype(jnp.float32).reshape(-1, targ.shape[-1])
    out = pl.pallas_call(
        _ce_kernel,
        out_shape=_scalar_out(),
        in_specs=[_VMEM, _VMEM],
        out_specs=_VMEM,
    )(p2, t2)
    return out[0, 0]


# ----------------------------- SG (loss_SG) ----------------------------------------------
def _sg_stats_kernel(p_ref, t_ref, msg_ref, cos_ref):
    p = p_ref[...]
    t = t_ref[...]
    sump = jnp.sum(p * p, axis=1, keepdims=True)           # (B, 1)
    sumt = jnp.sum(t * t, axis=1, keepdims=True)           # (B, 1)
    sumpt = jnp.sum(p * t, axis=1, keepdims=True)          # (B, 1)
    msg_ref[...] = jnp.sqrt(sump / sumt) - 1.0
    cos_ref[...] = sumpt / jnp.sqrt(sump * sumt)


@jax.jit
def sg_loss(pred, targ):
    # 2-D (B, D) inputs; reductions along dim 1 as in the reference.
    p2 = pred.astype(jnp.float32)
    t2 = targ.astype(jnp.float32)
    B = p2.shape[0]
    msg, cosr = pl.pallas_call(
        _sg_stats_kernel,
        out_shape=(
            jax.ShapeDtypeStruct((B, 1), jnp.float32),
            jax.ShapeDtypeStruct((B, 1), jnp.float32),
        ),
        in_specs=[_VMEM, _VMEM],
        out_specs=(_VMEM, _VMEM),
    )(p2, t2)
    # TODO(synk): torch.acos has no guaranteed Mosaic lowering; finish the tiny (B,) tail in XLA.
    psg = jnp.arccos(cosr) * (1.0 / math.pi)
    return jnp.mean(jnp.sqrt(msg * msg + psg * psg))


# ----------------------------- check_lds (lds regularizer) -------------------------------
def _lds_sym_kernel(p_ref, pt_ref, tau_ref, m_ref):
    # m[i, j] = p[i, j] + p[j, i] - 2 * exp(tau)[j]   (torch broadcasting of the (H,) tau)
    m_ref[...] = p_ref[...] + pt_ref[...] - 2.0 * tau_ref[...]


def _softplus_sum_kernel(w_ref, o_ref):
    w = w_ref[...]                                          # (1, H)
    o_ref[...] = jnp.sum(jnp.log(jnp.exp(w) + 1.0), axis=1, keepdims=True)


def check_lds_value(model):
    """JAX/Pallas port of check_lds.forward. `model` is a dict with
    'weight_hh' (k*H, H) or (H, H), 'nhidden' int, optional 'tau' (H,)."""
    p = jnp.asarray(model["weight_hh"], jnp.float32)
    nhidden = int(model["nhidden"])
    if nhidden < p.shape[0]:
        p = p[-nhidden:, :]                                 # == p.split(nhidden)[-1]
    tau = model.get("tau", None)
    if tau is not None:
        tau_e = jnp.exp(jnp.asarray(tau, jnp.float32))
    else:
        tau_e = jnp.ones((nhidden,), jnp.float32)

    # Symmetrization in Pallas; transpose pre-computed host-side (no in-kernel .T).
    m = pl.pallas_call(
        _lds_sym_kernel,
        out_shape=jax.ShapeDtypeStruct((nhidden, nhidden), jnp.float32),
        in_specs=[_VMEM, _VMEM, _VMEM],
        out_specs=_VMEM,
    )(p, p.T, tau_e.reshape(1, nhidden))

    # TODO(synk): torch.symeig (symmetric eigendecomposition) has no Pallas equivalent;
    # computed with jnp.linalg.eigvalsh (lower-triangle convention, matching torch default).
    w = jnp.linalg.eigvalsh(m).astype(jnp.float32)

    out = pl.pallas_call(
        _softplus_sum_kernel,
        out_shape=_scalar_out(),
        in_specs=[_VMEM],
        out_specs=_VMEM,
    )(w.reshape(1, nhidden))
    return out[0, 0]


# ----------------------------- trainingloss ----------------------------------------------
class TrainingLoss:
    """JAX/Pallas port of trainingloss (models/RNNcustom.py)."""

    def __init__(self, losstype, lds=None, ldsweight=0.0):
        if losstype == "MSE":
            self.loss = mse_loss
        elif losstype == "CE":
            self.loss = ce_loss
        elif losstype == "SG":
            self.loss = sg_loss
        else:
            raise ValueError("Invalid loss function.")
        self.use_lds = lds == "lds"
        self.ldsweight = ldsweight

    def __call__(self, pred, targ, model=None, otherloss=None):
        lossvalues = [self.loss(pred, targ)]
        if self.use_lds:
            lossvalues.append(check_lds_value(model) * self.ldsweight)
        if otherloss is not None:
            lossvalues.append(jnp.asarray(otherloss, jnp.float32))
        total = jnp.sum(jnp.stack(lossvalues))
        return total, lossvalues


# ----------------------------- demo / self-check ------------------------------------------
if __name__ == "__main__":
    key = jax.random.PRNGKey(0)
    k1, k2, k3, k4, k5, k6 = jax.random.split(key, 6)

    B, D, nhidden = 8, 32, 32
    pred = jax.random.normal(k1, (B, D), jnp.float32)
    targ = jax.random.normal(k2, (B, D), jnp.float32)
    pred_prob = jax.nn.sigmoid(jax.random.normal(k3, (B, D), jnp.float32)) * 0.98 + 0.01
    targ_bin = (jax.random.uniform(k4, (B, D)) > 0.5).astype(jnp.float32)

    # GRU-style hidden weight (3H, H) so the split(nhidden)[-1] path is exercised.
    model = {
        "weight_hh": 0.3 * jax.random.normal(k5, (3 * nhidden, nhidden), jnp.float32),
        "nhidden": nhidden,
        "tau": 0.1 * jax.random.normal(k6, (nhidden,), jnp.float32),
    }

    crit_mse = TrainingLoss("MSE", lds="lds", ldsweight=0.1)
    total_mse, vals_mse = crit_mse(pred, targ, model)

    crit_ce = TrainingLoss("CE")
    total_ce, vals_ce = crit_ce(pred_prob, targ_bin, model)

    crit_sg = TrainingLoss("SG")
    total_sg, vals_sg = crit_sg(pred, targ, model, otherloss=jnp.float32(0.25))

    total_mse, total_ce, total_sg = jax.block_until_ready((total_mse, total_ce, total_sg))
    assert all(bool(jnp.isfinite(x)) for x in (total_mse, total_ce, total_sg))

    # pure-JAX references
    ref_mse = jnp.mean((pred - targ) ** 2)
    ref_ce = jnp.mean(
        -(1.0 - targ_bin) * jnp.log10(1.0 - pred_prob) - targ_bin * jnp.log10(pred_prob)
    )
    sump = jnp.sum(pred**2, 1)
    sumt = jnp.sum(targ**2, 1)
    sumpt = jnp.sum(pred * targ, 1)
    msg = jnp.sqrt(sump / sumt) - 1.0
    psg = jnp.arccos(sumpt / jnp.sqrt(sump * sumt)) / jnp.pi
    ref_sg = jnp.mean(jnp.sqrt(msg**2 + psg**2))
    p_last = model["weight_hh"][-nhidden:, :]
    m_ref = p_last + p_last.T - 2.0 * jnp.exp(model["tau"])[None, :]
    ref_lds = jnp.sum(jnp.log(jnp.exp(jnp.linalg.eigvalsh(m_ref)) + 1.0))

    assert jnp.allclose(vals_mse[0], ref_mse, rtol=1e-3, atol=1e-5)
    assert jnp.allclose(vals_ce[0], ref_ce, rtol=1e-3, atol=1e-5)
    assert jnp.allclose(vals_sg[0], ref_sg, rtol=1e-3, atol=1e-5)
    assert jnp.allclose(vals_mse[1], 0.1 * ref_lds, rtol=1e-3, atol=1e-5)
    assert jnp.allclose(total_mse, vals_mse[0] + vals_mse[1], rtol=1e-4, atol=1e-5)
    assert jnp.allclose(total_sg, vals_sg[0] + 0.25, rtol=1e-4, atol=1e-5)

    print("KERNEL_OK")
</pallas_src>

<mosaic_0001>
module attributes {stable_mosaic.version = 11 : i64} {
  func.func @_mse_kernel(%arg0: memref<8x32xf32, #tpu.memory_space<vmem>>, %arg1: memref<8x32xf32, #tpu.memory_space<vmem>>, %arg2: memref<1x1xf32, #tpu.memory_space<vmem>>) attributes {dimension_semantics = [], scalar_prefetch = 0 : i64, scratch_operands = 0 : i64, tpu.core_type = #tpu.core_type<tc>} {
    %c0 = arith.constant 0 : index
    %c0_0 = arith.constant 0 : index
    %0 = vector.load %arg0[%c0, %c0_0] : memref<8x32xf32, #tpu.memory_space<vmem>>, vector<8x32xf32>
    %c0_1 = arith.constant 0 : index
    %c0_2 = arith.constant 0 : index
    %1 = vector.load %arg1[%c0_1, %c0_2] : memref<8x32xf32, #tpu.memory_space<vmem>>, vector<8x32xf32>
    %2 = arith.subf %0, %1 : vector<8x32xf32>
    %3 = arith.mulf %2, %2 : vector<8x32xf32>
    %cst = arith.constant dense<0.000000e+00> : vector<8xf32>
    %4 = vector.multi_reduction <add>, %3, %cst [1] : vector<8x32xf32> to vector<8xf32>
    %5 = vector.shape_cast %4 : vector<8xf32> to vector<8x1xf32>
    %cst_3 = arith.constant dense<0.000000e+00> : vector<1xf32>
    %6 = vector.multi_reduction <add>, %5, %cst_3 [0] : vector<8x1xf32> to vector<1xf32>
    %7 = vector.shape_cast %6 : vector<1xf32> to vector<1x1xf32>
    %cst_4 = arith.constant 3.906250e-03 : f32
    %8 = vector.broadcast %cst_4 : f32 to vector<1x1xf32>
    %9 = arith.mulf %7, %8 : vector<1x1xf32>
    %c0_5 = arith.constant 0 : index
    %c0_6 = arith.constant 0 : index
    %10 = vector.load %arg2[%c0_5, %c0_6] : memref<1x1xf32, #tpu.memory_space<vmem>>, vector<1x1xf32>
    tpu.vector_store %arg2[%c0_5, %c0_6], %9 {strides = array<i32>} : memref<1x1xf32, #tpu.memory_space<vmem>>, vector<1x1xf32>,
    return
  }
}

</mosaic_0001>

<llo_original>
// kernel: mse_loss.1
$region0: #{mse_loss.1}
  #allocation0 [shape = 'u32[]', space=smem, size = 0x4, offset = 0x4, fixed_abs, tag = 'smem constant byte address 0x4 - core index']
  #allocation1 [shape = 'u32[144,128]{1,0:T(1,128)}', space=vmem, size = 0x12000, scoped, tag = 'internal scratch']
  %s0 = inlined_call_operand.hbm [shape: f32[8,32], index: 0, kind: input, shape index: {}]
  %s1 = inlined_call_operand.hbm [shape: f32[8,32], index: 1, kind: input, shape index: {}]
  %s2 = inlined_call_operand.hbm [shape: f32[1,1], index: 2, kind: output, shape index: {}]
  %s3 = sld [smem:[#allocation0]]
  $region26: #{mse_loss.1} parent=0
    _
  %s5 = ssub.s32 1, %s3
  %s6 = scalar_select 0, %s5, %s3
  $region1: #{mse_loss.1} parent=0
    #allocation2 [shape = 'u8[4096]{0}', space=vmem, size = 0x1000, scoped, tag = 'input window, operand 0, single buffered']
    #allocation3 [shape = 's32[1]{0}', space=sflag, size = 0x4, scoped, tag = 'scoped memory for mse_loss.1']
    #allocation4 [shape = 's32[1]{0}', space=sflag, size = 0x4, scoped, tag = 'scoped memory for mse_loss.1']
    #allocation5 [shape = 'u8[4096]{0}', space=vmem, size = 0x1000, scoped, tag = 'input window, operand 1, single buffered']
    #allocation6 [shape = 's32[1]{0}', space=sflag, size = 0x4, scoped, tag = 'scoped memory for mse_loss.1']
    #allocation7 [shape = 'u8[512]{0}', space=vmem, size = 0x400, scoped, tag = 'output window, operand 0, single buffered']
    %7 = vsyncpa [#allocation3], 0
    %8 = vsyncpa [#allocation6], 0
    %9 = vsyncpa [#allocation4], 0
    // Predicated region
    $region2: #{mse_loss.1} parent=1 // pred_check
      _
    $region3: #{mse_loss.1} parent=1 // pred_check_branch
      %11 = sbr.rel (0) target = $region5
    $region4: #{mse_loss.1} parent=1 // pred_region
      %s13 = ssub.s32 128, 128
      %14 = vsyncadd [#allocation3], %s13
      %s16 = sshll.u32 [#allocation2], 4
      %s17 = int_to_ptr.vmem [resolvable:$true] %s16
      %19 = dma.hbm_to_vmem [thread:$0]  %s0, 128, %s17, [#allocation3]
    $region5: #{mse_loss.1} parent=1 // pred_fallthru
      _
    // Predicated region
    $region6: #{mse_loss.1} parent=1 // pred_check
      _
    $region7: #{mse_loss.1} parent=1 // pred_check_branch
      %21 = sbr.rel (0) target = $region9
    $region8: #{mse_loss.1} parent=1 // pred_region
      %s23 = ssub.s32 128, 128
      %24 = vsyncadd [#allocation6], %s23
      %s26 = sshll.u32 [#allocation5], 4
      %s27 = int_to_ptr.vmem [resolvable:$true] %s26
      %29 = dma.hbm_to_vmem [thread:$0]  %s1, 128, %s27, [#allocation6]
    $region9: #{mse_loss.1} parent=1 // pred_fallthru
      _
    // Predicated region
    $region10: #{mse_loss.1} parent=1 // pred_check
      _
    $region11: #{mse_loss.1} parent=1 // pred_check_branch
      %31 = sbr.rel (0) target = $region13
    $region12: #{mse_loss.1} parent=1 // pred_region
      %32 = dma.done [#allocation3], 128
    $region13: #{mse_loss.1} parent=1 // pred_fallthru
      _
    // Predicated region
    $region14: #{mse_loss.1} parent=1 // pred_check
      _
    $region15: #{mse_loss.1} parent=1 // pred_check_branch
      %34 = sbr.rel (0) target = $region17
    $region16: #{mse_loss.1} parent=1 // pred_region
      %35 = dma.done [#allocation6], 128
    $region17: #{mse_loss.1} parent=1 // pred_fallthru
      _
    %v36 = vld [vmem:[#allocation2] sm:$0xff]
    %v37 = vld [vmem:[#allocation5] sm:$0xff]
    %v38 = vsub.f32 %v36, %v37
    %v39 = vmul.f32 %v38, %v38
    %vm40 = vcmask 261120
    %v41 = vsel %vm40, %v39, 0.0
    %42 = vadd.xlane.f32.xlu0 %v41
    %v43 = vpop.xlane.xlu0 %42
    %v44 = vrot.slane %v43, 4
    %v45 = vadd.f32 %v43, %v44
    %v46 = vrot.slane %v45, 2
    %v47 = vadd.f32 %v45, %v46
    %v48 = vrot.slane %v47, 1
    %v49 = vadd.f32 %v47, %v48
    %v50 = vmul.f32 %v49, 0.00390625
    %vm51 = vcmask 0
    %52 = vst.msk [vmem:[#allocation7] sm:$0x1] %vm51, %v50
    // Predicated region
    $region18: #{mse_loss.1} parent=1 // pred_check
      _
    $region19: #{mse_loss.1} parent=1 // pred_check_branch
      %54 = sbr.rel (0) target = $region21
    $region20: #{mse_loss.1} parent=1 // pred_region
      %s56 = ssub.s32 16, 16
      %57 = vsyncadd [#allocation4], %s56
      %s59 = sshll.u32 [#allocation7], 4
      %s60 = int_to_ptr.vmem [resolvable:$true] %s59
      %62 = dma.vmem_to_hbm [thread:$0]  %s60, 16, %s2, [#allocation4]
    $region21: #{mse_loss.1} parent=1 // pred_fallthru
      _
    // Predicated region
    $region22: #{mse_loss.1} parent=1 // pred_check
      _
    $region23: #{mse_loss.1} parent=1 // pred_check_branch
      %64 = sbr.rel (0) target = $region25
    $region24: #{mse_loss.1} parent=1 // pred_region
      %65 = dma.done [#allocation4], 16
    $region25: #{mse_loss.1} parent=1 // pred_fallthru
      _
    %66 = vsyncpa [#allocation3], 1
    %67 = vsyncpa [#allocation6], 1
    %68 = vsyncpa [#allocation4], 1

</llo_original>
